<compile_context>
chip_gen: v6e
topology: v6e:2x2x1
jax: 0.10.0
libtpu: 0.0.40
codegen_flags: <defaults>
</compile_context>

<pallas_src>
import jax
import jax.numpy as jnp
from jax.experimental import pallas as pl
from jax.experimental.pallas import tpu as pltpu


def _round_up(n, m):
    return ((n + m - 1) // m) * m


def _mlp_kernel(x_ref, w1_ref, b1_ref, w2_ref, b2_ref, o_ref):
    # Cast the streamed activations to the matmul compute dtype in-kernel
    # (VPU, hidden under the tile DMA) instead of a separate XLA cast op.
    x = x_ref[...].astype(w1_ref.dtype)
    # Linear 1 (MXU, f32 accumulation) + bias + ReLU.
    h = jnp.dot(x, w1_ref[...], preferred_element_type=jnp.float32)
    h = jnp.maximum(h + b1_ref[...], 0.0)
    # Linear 2 + bias + ReLU (h back to bf16 for the MXU; padded hidden lanes
    # are zero -> numerically inert).
    y = jnp.dot(h.astype(w2_ref.dtype), w2_ref[...],
                preferred_element_type=jnp.float32)
    y = jnp.maximum(y + b2_ref[...], 0.0)
    o_ref[...] = y.astype(o_ref.dtype)


def prepare_domain_classifier_params(w1, b1, w2, b2, *,
                                     compute_dtype=jnp.bfloat16):
    """One-time layout prep (call at parameter-load time, not per forward).

    torch nn.Linear layout in:
      w1: (D_hid, D_in),  b1: (D_hid,)
      w2: (D_out, D_hid), b2: (D_out,)
    Returns (w1_t, b1_p, w2_t, b2_p) with the hidden dim zero-padded up to a
    multiple of 128 so the intermediate h is lane-dense.  ReLU(x@0 + 0) = 0,
    so the padded lanes are numerically inert.
    """
    D_hid, D_in = w1.shape
    D_out = w2.shape[0]
    D_hid_p = _round_up(D_hid, 128)
    w1_t = jnp.zeros((D_in, D_hid_p), compute_dtype).at[:, :D_hid].set(
        w1.T.astype(compute_dtype))
    b1_p = jnp.zeros((1, D_hid_p), jnp.float32).at[:, :D_hid].set(
        b1.astype(jnp.float32))
    w2_t = jnp.zeros((D_hid_p, D_out), compute_dtype).at[:D_hid, :].set(
        w2.T.astype(compute_dtype))
    b2_p = b2.reshape(1, D_out).astype(jnp.float32)
    return w1_t, b1_p, w2_t, b2_p


def domain_classifier_forward(x, params, *, block_b=None, out_dtype=None):
    """Fused forward: relu(relu(x @ w1.T + b1) @ w2.T + b2).

    x: (B, D_in); params from prepare_domain_classifier_params().
    out_dtype: defaults to x.dtype; pass jnp.bfloat16 if downstream consumes
    bf16 (halves the output HBM stream).
    """
    w1_t, b1_p, w2_t, b2_p = params
    B, D_in = x.shape
    assert w1_t.shape[0] == D_in
    D_hid_p = w1_t.shape[1]
    D_out = w2_t.shape[1]
    if out_dtype is None:
        out_dtype = x.dtype

    # ---- Batch tiling ------------------------------------------------------
    # Big tiles amortize the ~0.35us/step pipeline overhead.  2048 rows of
    # f32 in + f32 out double-buffered plus f32 intermediates is ~8 MiB,
    # comfortably inside v5e's 16 MiB scoped-VMEM default and v7x's 64 MiB
    # physical VMEM.  Multiple of 16 keeps bf16 sublane packing clean.
    if block_b is None:
        block_b = min(2048, _round_up(B, 16))
    block_b = max(16, _round_up(block_b, 16))
    n_blocks = pl.cdiv(B, block_b)   # ragged tail: Pallas masks the partial block

    cost = pl.CostEstimate(
        flops=2 * B * (D_in * D_hid_p + D_hid_p * D_out),
        transcendentals=0,
        bytes_accessed=(x.size * x.dtype.itemsize
                        + w1_t.size * w1_t.dtype.itemsize
                        + w2_t.size * w2_t.dtype.itemsize
                        + (b1_p.size + b2_p.size) * 4
                        + B * D_out * jnp.dtype(out_dtype).itemsize),
    )

    return pl.pallas_call(
        _mlp_kernel,
        out_shape=jax.ShapeDtypeStruct((B, D_out), out_dtype),
        grid_spec=pltpu.PrefetchScalarGridSpec(
            num_scalar_prefetch=0,
            grid=(n_blocks,),
            in_specs=[
                pl.BlockSpec((block_b, D_in), lambda i: (i, 0)),    # x (streamed)
                pl.BlockSpec((D_in, D_hid_p), lambda i: (0, 0)),    # w1 (resident)
                pl.BlockSpec((1, D_hid_p), lambda i: (0, 0)),       # b1 (resident)
                pl.BlockSpec((D_hid_p, D_out), lambda i: (0, 0)),   # w2 (resident)
                pl.BlockSpec((1, D_out), lambda i: (0, 0)),         # b2 (resident)
            ],
            out_specs=pl.BlockSpec((block_b, D_out), lambda i: (i, 0)),
        ),
        compiler_params=pltpu.CompilerParams(
            dimension_semantics=("parallel",),   # batch-axis sharding on megacore
            vmem_limit_bytes=32 << 20,           # headroom for block_b up to ~4096
        ),
        cost_estimate=cost,
    )(x, w1_t, b1_p, w2_t, b2_p)


if __name__ == "__main__":
    input_nc = 128
    output_nc = 128
    hidden = input_nc // 2   # 64
    batch = 24               # deliberately NOT a multiple of the tile size

    key = jax.random.PRNGKey(0)
    k_x, k_w1, k_b1, k_w2, k_b2 = jax.random.split(key, 5)

    x = jax.random.normal(k_x, (batch, input_nc), dtype=jnp.float32)
    # torch nn.Linear layout: weight (out_features, in_features), bias (out_features,)
    w1 = jax.random.normal(k_w1, (hidden, input_nc), dtype=jnp.float32) * 0.05
    b1 = jax.random.normal(k_b1, (hidden,), dtype=jnp.float32) * 0.05
    w2 = jax.random.normal(k_w2, (output_nc, hidden), dtype=jnp.float32) * 0.05
    b2 = jax.random.normal(k_b2, (output_nc,), dtype=jnp.float32) * 0.05

    # One-time parameter layout prep (hoisted out of the per-call path).
    params = prepare_domain_classifier_params(w1, b1, w2, b2)

    # Small demo: block_b=16 gives a 2-step grid with a partial last block
    # (exercises the maskless ragged-batch path and the multi-step grid).
    # Production callers leave block_b=None so the wrapper picks ~2048-row tiles.
    out = domain_classifier_forward(x, params, block_b=16)
    out = jax.block_until_ready(out)

    # Reference (same semantics as the PyTorch forward), pure f32.
    ref = jnp.maximum(x @ w1.T + b1, 0.0)
    ref = jnp.maximum(ref @ w2.T + b2, 0.0)
    assert out.shape == (batch, output_nc)
    # bf16 matmul operands with f32 accumulation -> looser tolerance than pure f32.
    assert jnp.allclose(out, ref, atol=2e-2, rtol=2e-2), \
        float(jnp.max(jnp.abs(out - ref)))

    print("KERNEL_OK")
</pallas_src>

<mosaic_0001>
module attributes {stable_mosaic.version = 11 : i64} {
  func.func @_mlp_kernel(%arg0: i32, %arg1: memref<16x128xf32, #tpu.memory_space<vmem>>, %arg2: memref<128x128xbf16, #tpu.memory_space<vmem>>, %arg3: memref<1x128xf32, #tpu.memory_space<vmem>>, %arg4: memref<128x128xbf16, #tpu.memory_space<vmem>>, %arg5: memref<1x128xf32, #tpu.memory_space<vmem>>, %arg6: memref<16x128xf32, #tpu.memory_space<vmem>>) attributes {dimension_semantics = [#tpu.dimension_semantics<parallel>], iteration_bounds = array<i64: 2>, scalar_prefetch = 0 : i64, scratch_operands = 0 : i64, tpu.core_type = #tpu.core_type<tc>, window_params = [{transform_indices = @transform_0, window_bounds = array<i64: 16, 128>}, {pipeline_mode = #tpu.pipeline_mode<synchronous>, transform_indices = @transform_1, window_bounds = array<i64: 128, 128>}, {pipeline_mode = #tpu.pipeline_mode<synchronous>, transform_indices = @transform_2, window_bounds = array<i64: 1, 128>}, {pipeline_mode = #tpu.pipeline_mode<synchronous>, transform_indices = @transform_3, window_bounds = array<i64: 128, 128>}, {pipeline_mode = #tpu.pipeline_mode<synchronous>, transform_indices = @transform_4, window_bounds = array<i64: 1, 128>}, {transform_indices = @transform_5, window_bounds = array<i64: 16, 128>}]} {
    %c0 = arith.constant 0 : index
    %c0_0 = arith.constant 0 : index
    %0 = vector.load %arg1[%c0, %c0_0] : memref<16x128xf32, #tpu.memory_space<vmem>>, vector<16x128xf32>
    %1 = arith.truncf %0 : vector<16x128xf32> to vector<16x128xbf16>
    %c0_1 = arith.constant 0 : index
    %c0_2 = arith.constant 0 : index
    %2 = vector.load %arg2[%c0_1, %c0_2] : memref<128x128xbf16, #tpu.memory_space<vmem>>, vector<128x128xbf16>
    %cst = arith.constant dense<0.000000e+00> : vector<16x128xf32>
    %3 = tpu.matmul %1, %2, %cst {dimension_numbers = #tpu.dot_dimension_numbers<[1], [0], [0], [1], [0, 0, 1, 1], [], []>} : vector<16x128xbf16>, vector<128x128xbf16>, vector<16x128xf32> -> vector<16x128xf32>
    %c0_3 = arith.constant 0 : index
    %c0_4 = arith.constant 0 : index
    %4 = vector.load %arg3[%c0_3, %c0_4] : memref<1x128xf32, #tpu.memory_space<vmem>>, vector<1x128xf32>
    %5 = vector.broadcast %4 : vector<1x128xf32> to vector<16x128xf32>
    %6 = arith.addf %3, %5 : vector<16x128xf32>
    %cst_5 = arith.constant 0.000000e+00 : f32
    %7 = vector.broadcast %cst_5 : f32 to vector<16x128xf32>
    %8 = arith.maximumf %6, %7 : vector<16x128xf32>
    %9 = arith.truncf %8 : vector<16x128xf32> to vector<16x128xbf16>
    %c0_6 = arith.constant 0 : index
    %c0_7 = arith.constant 0 : index
    %10 = vector.load %arg4[%c0_6, %c0_7] : memref<128x128xbf16, #tpu.memory_space<vmem>>, vector<128x128xbf16>
    %cst_8 = arith.constant dense<0.000000e+00> : vector<16x128xf32>
    %11 = tpu.matmul %9, %10, %cst_8 {dimension_numbers = #tpu.dot_dimension_numbers<[1], [0], [0], [1], [0, 0, 1, 1], [], []>} : vector<16x128xbf16>, vector<128x128xbf16>, vector<16x128xf32> -> vector<16x128xf32>
    %c0_9 = arith.constant 0 : index
    %c0_10 = arith.constant 0 : index
    %12 = vector.load %arg5[%c0_9, %c0_10] : memref<1x128xf32, #tpu.memory_space<vmem>>, vector<1x128xf32>
    %13 = vector.broadcast %12 : vector<1x128xf32> to vector<16x128xf32>
    %14 = arith.addf %11, %13 : vector<16x128xf32>
    %cst_11 = arith.constant 0.000000e+00 : f32
    %15 = vector.broadcast %cst_11 : f32 to vector<16x128xf32>
    %16 = arith.maximumf %14, %15 : vector<16x128xf32>
    %c0_12 = arith.constant 0 : index
    %c0_13 = arith.constant 0 : index
    %17 = vector.load %arg6[%c0_12, %c0_13] : memref<16x128xf32, #tpu.memory_space<vmem>>, vector<16x128xf32>
    tpu.vector_store %arg6[%c0_12, %c0_13], %16 {strides = array<i32>} : memref<16x128xf32, #tpu.memory_space<vmem>>, vector<16x128xf32>,
    return
  }
  func.func @transform_0(%arg0: i32) -> (i32, i32) {
    %c0_i32 = arith.constant 0 : i32
    %c0_i32_0 = arith.constant 0 : i32
    return %arg0, %c0_i32 : i32, i32
  }
  func.func @transform_1(%arg0: i32) -> (i32, i32) {
    %c0_i32 = arith.constant 0 : i32
    %c0_i32_0 = arith.constant 0 : i32
    %c0_i32_1 = arith.constant 0 : i32
    return %c0_i32, %c0_i32_0 : i32, i32
  }
  func.func @transform_2(%arg0: i32) -> (i32, i32) {
    %c0_i32 = arith.constant 0 : i32
    %c0_i32_0 = arith.constant 0 : i32
    %c0_i32_1 = arith.constant 0 : i32
    return %c0_i32, %c0_i32_0 : i32, i32
  }
  func.func @transform_3(%arg0: i32) -> (i32, i32) {
    %c0_i32 = arith.constant 0 : i32
    %c0_i32_0 = arith.constant 0 : i32
    %c0_i32_1 = arith.constant 0 : i32
    return %c0_i32, %c0_i32_0 : i32, i32
  }
  func.func @transform_4(%arg0: i32) -> (i32, i32) {
    %c0_i32 = arith.constant 0 : i32
    %c0_i32_0 = arith.constant 0 : i32
    %c0_i32_1 = arith.constant 0 : i32
    return %c0_i32, %c0_i32_0 : i32, i32
  }
  func.func @transform_5(%arg0: i32) -> (i32, i32) {
    %c0_i32 = arith.constant 0 : i32
    %c0_i32_0 = arith.constant 0 : i32
    return %arg0, %c0_i32 : i32, i32
  }
}

</mosaic_0001>

<llo_original>
// kernel: tpu_custom_call.1
$region0: #{tpu_custom_call.1}
  #allocation0 [shape = 'u32[]', space=smem, size = 0x4, offset = 0x4, fixed_abs, tag = 'smem constant byte address 0x4 - core index']
  #allocation1 [shape = 'u32[144,128]{1,0:T(1,128)}', space=vmem, size = 0x12000, scoped, tag = 'internal scratch']
  %s0 = inlined_call_operand.hbm [shape: f32[24,128], index: 0, kind: input, shape index: {}]
  %s1 = inlined_call_operand.hbm [shape: bf16[128,128], index: 1, kind: input, shape index: {}]
  %s2 = inlined_call_operand.vmem [shape: f32[1,128], index: 2, kind: input, shape index: {}]
  %s3 = inlined_call_operand.hbm [shape: bf16[128,128], index: 3, kind: input, shape index: {}]
  %s4 = inlined_call_operand.vmem [shape: f32[1,128], index: 4, kind: input, shape index: {}]
  %s5 = inlined_call_operand.hbm [shape: f32[24,128], index: 5, kind: output, shape index: {}]
  %s6 = sld [smem:[#allocation0]]
  $region65: #{tpu_custom_call.1} parent=0
    _
  %s8 = ssub.s32 1, %s6
  %s9 = scalar_select 0, %s8, %s6
  $region1: #{tpu_custom_call.1} parent=0
    #allocation2 [shape = 'u8[16384]{0}', space=vmem, size = 0x4000, scoped, tag = 'input window, operand 0']
    #allocation3 [shape = 's32[2]{0}', space=sflag, size = 0x8, scoped, tag = 'scoped memory for tpu_custom_call.1']
    #allocation4 [shape = 's32[2]{0}', space=sflag, size = 0x8, scoped, tag = 'scoped memory for tpu_custom_call.1']
    #allocation5 [shape = 'u8[32768]{0}', space=vmem, size = 0x8000, scoped, tag = 'input window, operand 1, single buffered']
    #allocation6 [shape = 's32[1]{0}', space=sflag, size = 0x4, scoped, tag = 'scoped memory for tpu_custom_call.1']
    #allocation7 [shape = 'u8[32768]{0}', space=vmem, size = 0x8000, scoped, tag = 'input window, operand 3, single buffered']
    #allocation8 [shape = 'u8[16384]{0}', space=vmem, size = 0x4000, scoped, tag = 'output window, operand 0']
    %10 = vsyncpa [#allocation3], 0
    %s11 = scalar_lea.sflag [#allocation3], 1
    %12 = vsyncpa %s11, 0
    %13 = vsyncpa [#allocation6], 0
    %14 = vsyncpa [#allocation4], 0
    %s15 = scalar_lea.sflag [#allocation4], 1
    %16 = vsyncpa %s15, 0
    loop: start=0, step=1, limit=4
    $region2: #{tpu_custom_call.1} parent=1 // loop_pre_header
      _
    $region3: #{tpu_custom_call.1} parent=1 // loop_header
      %s18 = sphi 0, %s22
      %p19 = scmp.ge.s32.totalorder %s18, 4
      %s28 = sphi 0, %s30
      %s31 = sphi 0, %s28
      %s32 = sphi 0, %s31
      %s48 = sphi 0, %s32
      %s52 = sphi 0, %s52
      %s54 = sphi 0, %s52
      %s55 = sphi 0, %s54
      %s69 = sphi 0, %s55
      %s73 = sphi 0, %s73
      %s75 = sphi 0, %s73
      %s76 = sphi 0, %s75
      %s90 = sphi 0, %s76
      %s94 = sphi 0, %s94
      %s96 = sphi 0, %s94
      %s97 = sphi 0, %s96
      %s111 = sphi 0, %s97
      %s115 = sphi 0, %s115
      %s117 = sphi 0, %s115
      %s118 = sphi 0, %s117
      %s132 = sphi 0, %s118
      %s138 = sphi 0, %s140
      %s141 = sphi 0, %s138
      %s142 = sphi 0, %s141
      %s158 = sphi 0, %s142
    $region4: #{tpu_custom_call.1} parent=1 // loop_header_branch
      %21 = sbr.rel (%p19) target = $region8
    $region5: #{tpu_custom_call.1} parent=1 // loop_body
      %s23 = ssub.s32 %s18, 1
      %s24 = ssub.s32 %s18, 2
      %s25 = sadd.s32 %s18, 1
      %s26 = ssub.s32 %s18, %s25
      %p27 = scmp.eq.s32.totalorder %s26, 0
      %s29 = sadd.s32 %s28, 1
      %s30 = scalar_select %p27, %s28, %s29
      %p33 = pneg %p27
      %p34 = scmp.eq.s32.totalorder %s18, 1
      %p35 = por %p33, %p34
      %p36 = scmp.ne.s32.totalorder %s28, %s31
      %p37 = scmp.eq.s32.totalorder %s18, 0
      %p38 = por %p36, %p37
      %p39 = scmp.ne.s32.totalorder %s28, %s31
      %p40 = scmp.eq.s32.totalorder %s23, 1
      %p41 = por %p39, %p40
      %p42 = scmp.ne.s32.totalorder %s31, %s32
      %p43 = scmp.eq.s32.totalorder %s23, 0
      %p44 = por %p42, %p43
      %p45 = scmp.ne.s32.totalorder %s31, %s32
      %p46 = scmp.eq.s32.totalorder %s24, 1
      %p47 = por %p45, %p46
      %p49 = scmp.ne.s32.totalorder %s32, %s48
      %p50 = scmp.eq.s32.totalorder %s24, 0
      %p51 = por %p49, %p50
      %s53 = sadd.s32 %s52, 1
      %p56 = scmp.eq.s32.totalorder %s18, 1
      %p57 = scmp.ne.s32.totalorder %s52, %s54
      %p58 = scmp.eq.s32.totalorder %s18, 0
      %p59 = por %p57, %p58
      %p60 = scmp.ne.s32.totalorder %s52, %s54
      %p61 = scmp.eq.s32.totalorder %s23, 1
      %p62 = por %p60, %p61
      %p63 = scmp.ne.s32.totalorder %s54, %s55
      %p64 = scmp.eq.s32.totalorder %s23, 0
      %p65 = por %p63, %p64
      %p66 = scmp.ne.s32.totalorder %s54, %s55
      %p67 = scmp.eq.s32.totalorder %s24, 1
      %p68 = por %p66, %p67
      %p70 = scmp.ne.s32.totalorder %s55, %s69
      %p71 = scmp.eq.s32.totalorder %s24, 0
      %p72 = por %p70, %p71
      %s74 = sadd.s32 %s73, 1
      %p77 = scmp.eq.s32.totalorder %s18, 1
      %p78 = scmp.ne.s32.totalorder %s73, %s75
      %p79 = scmp.eq.s32.totalorder %s18, 0
      %p80 = por %p78, %p79
      %p81 = scmp.ne.s32.totalorder %s73, %s75
      %p82 = scmp.eq.s32.totalorder %s23, 1
      %p83 = por %p81, %p82
      %p84 = scmp.ne.s32.totalorder %s75, %s76
      %p85 = scmp.eq.s32.totalorder %s23, 0
      %p86 = por %p84, %p85
      %p87 = scmp.ne.s32.totalorder %s75, %s76
      %p88 = scmp.eq.s32.totalorder %s24, 1
      %p89 = por %p87, %p88
      %p91 = scmp.ne.s32.totalorder %s76, %s90
      %p92 = scmp.eq.s32.totalorder %s24, 0
      %p93 = por %p91, %p92
      %s95 = sadd.s32 %s94, 1
      %p98 = scmp.eq.s32.totalorder %s18, 1
      %p99 = scmp.ne.s32.totalorder %s94, %s96
      %p100 = scmp.eq.s32.totalorder %s18, 0
      %p101 = por %p99, %p100
      %p102 = scmp.ne.s32.totalorder %s94, %s96
      %p103 = scmp.eq.s32.totalorder %s23, 1
      %p104 = por %p102, %p103
      %p105 = scmp.ne.s32.totalorder %s96, %s97
      %p106 = scmp.eq.s32.totalorder %s23, 0
      %p107 = por %p105, %p106
      %p108 = scmp.ne.s32.totalorder %s96, %s97
      %p109 = scmp.eq.s32.totalorder %s24, 1
      %p110 = por %p108, %p109
      %p112 = scmp.ne.s32.totalorder %s97, %s111
      %p113 = scmp.eq.s32.totalorder %s24, 0
      %p114 = por %p112, %p113
      %s116 = sadd.s32 %s115, 1
      %p119 = scmp.eq.s32.totalorder %s18, 1
      %p120 = scmp.ne.s32.totalorder %s115, %s117
      %p121 = scmp.eq.s32.totalorder %s18, 0
      %p122 = por %p120, %p121
      %p123 = scmp.ne.s32.totalorder %s115, %s117
      %p124 = scmp.eq.s32.totalorder %s23, 1
      %p125 = por %p123, %p124
      %p126 = scmp.ne.s32.totalorder %s117, %s118
      %p127 = scmp.eq.s32.totalorder %s23, 0
      %p128 = por %p126, %p127
      %p129 = scmp.ne.s32.totalorder %s117, %s118
      %p130 = scmp.eq.s32.totalorder %s24, 1
      %p131 = por %p129, %p130
      %p133 = scmp.ne.s32.totalorder %s118, %s132
      %p134 = scmp.eq.s32.totalorder %s24, 0
      %p135 = por %p133, %p134
      %s136 = ssub.s32 %s18, %s25
      %p137 = scmp.eq.s32.totalorder %s136, 0
      %s139 = sadd.s32 %s138, 1
      %s140 = scalar_select %p137, %s138, %s139
      %p143 = pneg %p137
      %p144 = scmp.eq.s32.totalorder %s18, 1
      %p145 = por %p143, %p144
      %p146 = scmp.ne.s32.totalorder %s138, %s141
      %p147 = scmp.eq.s32.totalorder %s18, 0
      %p148 = por %p146, %p147
      %p149 = scmp.ne.s32.totalorder %s138, %s141
      %p150 = scmp.eq.s32.totalorder %s23, 1
      %p151 = por %p149, %p150
      %p152 = scmp.ne.s32.totalorder %s141, %s142
      %p153 = scmp.eq.s32.totalorder %s23, 0
      %p154 = por %p152, %p153
      %p155 = scmp.ne.s32.totalorder %s141, %s142
      %p156 = scmp.eq.s32.totalorder %s24, 1
      %p157 = por %p155, %p156
      %p159 = scmp.ne.s32.totalorder %s142, %s158
      %p160 = scmp.eq.s32.totalorder %s24, 0
      %p161 = por %p159, %p160
      %p162 = scmp.le.s32.totalorder 1, %s18
      %p163 = scmp.lt.s32.totalorder %s18, 3
      %p164 = pnand %p162, %p163
      %p165 = pneg %p164
      // Predicated region
      $region9: #{tpu_custom_call.1} parent=5 // pred_check
        _
      $region10: #{tpu_custom_call.1} parent=5 // pred_check_branch
        %167 = sbr.rel (%p164) target = $region12
      $region11: #{tpu_custom_call.1} parent=5 // pred_region
        %s168 = ssub.s32 %s18, 1
        // Predicated region
        $region13: #{tpu_custom_call.1} parent=11 // pred_check
          %p169 = pneg %p65
        $region14: #{tpu_custom_call.1} parent=11 // pred_check_branch
          %171 = sbr.rel (%p169) target = $region16
        $region15: #{tpu_custom_call.1} parent=11 // pred_region
          %s173 = ssub.s32 1024, 1024
          %174 = vsyncadd [#allocation6], %s173
          %s175 = sshll.u32 [#allocation5], 4
          %s176 = int_to_ptr.vmem [resolvable:$true] %s175
          %181 = dma.hbm_to_vmem [thread:$0]  %s1, 1024, %s176, [#allocation6], 64, 64, 4
        $region16: #{tpu_custom_call.1} parent=11 // pred_fallthru
          _
        // Predicated region
        $region17: #{tpu_custom_call.1} parent=11 // pred_check
          %p182 = pneg %p86
        $region18: #{tpu_custom_call.1} parent=11 // pred_check_branch
          %184 = sbr.rel (%p182) target = $region20
        $region19: #{tpu_custom_call.1} parent=11 // pred_region
          _
        $region20: #{tpu_custom_call.1} parent=11 // pred_fallthru
          _
        // Predicated region
        $region21: #{tpu_custom_call.1} parent=11 // pred_check
          %p185 = pneg %p107
        $region22: #{tpu_custom_call.1} parent=11 // pred_check_branch
          %187 = sbr.rel (%p185) target = $region24
        $region23: #{tpu_custom_call.1} parent=11 // pred_region
          %s189 = ssub.s32 1024, 1024
          %190 = vsyncadd [#allocation6], %s189
          %s191 = sshll.u32 [#allocation7], 4
          %s192 = int_to_ptr.vmem [resolvable:$true] %s191
          %197 = dma.hbm_to_vmem [thread:$0]  %s3, 1024, %s192, [#allocation6], 64, 64, 4
        $region24: #{tpu_custom_call.1} parent=11 // pred_fallthru
          _
        // Predicated region
        $region25: #{tpu_custom_call.1} parent=11 // pred_check
          %p198 = pneg %p128
        $region26: #{tpu_custom_call.1} parent=11 // pred_check_branch
          %200 = sbr.rel (%p198) target = $region28
        $region27: #{tpu_custom_call.1} parent=11 // pred_region
          _
        $region28: #{tpu_custom_call.1} parent=11 // pred_fallthru
          _
      $region12: #{tpu_custom_call.1} parent=5 // pred_fallthru
        _
      %p201 = scmp.lt.s32.totalorder %s18, 2
      // Predicated region
      $region29: #{tpu_custom_call.1} parent=5 // pred_check
        %p202 = pneg %p201
      $region30: #{tpu_custom_call.1} parent=5 // pred_check_branch
        %204 = sbr.rel (%p202) target = $region32
      $region31: #{tpu_custom_call.1} parent=5 // pred_region
        // Predicated region
        $region33: #{tpu_custom_call.1} parent=31 // pred_check
          %p205 = pneg %p38
        $region34: #{tpu_custom_call.1} parent=31 // pred_check_branch
          %207 = sbr.rel (%p205) target = $region36
        $region35: #{tpu_custom_call.1} parent=31 // pred_region
          %s208 = sand.u32 %s28, 1
          %s209 = scalar_lea.sflag [#allocation3], %s208
          %s210 = sand.u32 %s28, 1
          %s211 = smul.addr %s210, 16
          %s212 = scalar_lea.vmem [#allocation2], %s211
          %s213 = smul.u32 2, %s18
          %s214 = ssub.s32 3, %s213
          %p215 = scmp.lt.s32.totalorder %s214, 2
          %s216 = scalar_select %p215, %s214, 2
          %s217 = smul.u32 128, %s216
          %s219 = ssub.s32 256, %s217
          %220 = vsyncadd %s209, %s219
          %p221 = scmp.ne.s32.totalorder 0, %s217
          %s222 = smul.addr %s213, 128
          %s223 = scalar_lea.hbm %s0, %s222
          %s224 = smul.u32 8, %s216
          %s225 = sshll.u32 %s212, 4
          %s226 = int_to_ptr.vmem [resolvable:$true] %s225
          %s227 = sshll.u32 %s224, 4
          %231 = dma.hbm_to_vmem [thread:$0]  (%p221), %s223, %s227, %s226, %s209, 128, 128, 8
        $region36: #{tpu_custom_call.1} parent=31 // pred_fallthru
          _
      $region32: #{tpu_custom_call.1} parent=5 // pred_fallthru
        _
      %p232 = scmp.le.s32.totalorder 1, %s18
      %p233 = scmp.lt.s32.totalorder %s18, 3
      %p234 = pnand %p232, %p233
      %p235 = pneg %p234
      // Predicated region
      $region37: #{tpu_custom_call.1} parent=5 // pred_check
        _
      $region38: #{tpu_custom_call.1} parent=5 // pred_check_branch
        %237 = sbr.rel (%p234) target = $region40
      $region39: #{tpu_custom_call.1} parent=5 // pred_region
        %s238 = ssub.s32 %s18, 1
        %s239 = sand.u32 %s31, 1
        %s240 = scalar_lea.sflag [#allocation3], %s239
        %s241 = sand.u32 %s31, 1
        %s242 = smul.addr %s241, 16
        %s243 = scalar_lea.vmem [#allocation2], %s242
        // Predicated region
        $region41: #{tpu_custom_call.1} parent=39 // pred_check
          %p244 = pneg %p44
        $region42: #{tpu_custom_call.1} parent=39 // pred_check_branch
          %246 = sbr.rel (%p244) target = $region44
        $region43: #{tpu_custom_call.1} parent=39 // pred_region
          %247 = dma.done %s240, 256
        $region44: #{tpu_custom_call.1} parent=39 // pred_fallthru
          _
        // Predicated region
        $region45: #{tpu_custom_call.1} parent=39 // pred_check
          %p248 = pneg %p65
        $region46: #{tpu_custom_call.1} parent=39 // pred_check_branch
          %250 = sbr.rel (%p248) target = $region48
        $region47: #{tpu_custom_call.1} parent=39 // pred_region
          %251 = dma.done [#allocation6], 1024
        $region48: #{tpu_custom_call.1} parent=39 // pred_fallthru
          _
        // Predicated region
        $region49: #{tpu_custom_call.1} parent=39 // pred_check
          %p252 = pneg %p107
        $region50: #{tpu_custom_call.1} parent=39 // pred_check_branch
          %254 = sbr.rel (%p252) target = $region52
        $region51: #{tpu_custom_call.1} parent=39 // pred_region
          %255 = dma.done [#allocation6], 1024
        $region52: #{tpu_custom_call.1} parent=39 // pred_fallthru
          _
        %s256 = sand.u32 %s31, 1
        %s257 = scalar_lea.sflag [#allocation3], %s256
        %s258 = sand.u32 %s31, 1
        %s259 = smul.addr %s258, 16
        %s260 = scalar_lea.vmem [#allocation2], %s259
        %p261 = pneg %p44
        %p262 = pneg %p41
        %p263 = pneg %p65
        %p264 = pneg %p62
        %p265 = pneg %p86
        %p266 = pneg %p83
        %p267 = pneg %p107
        %p268 = pneg %p104
        %p269 = pneg %p128
        %p270 = pneg %p125
        %p271 = pneg %p154
        %p272 = pneg %p151
        %s273 = sand.u32 %s141, 1
        %s274 = scalar_lea.sflag [#allocation4], %s273
        %s275 = sand.u32 %s141, 1
        %s276 = smul.addr %s275, 16
        %s277 = scalar_lea.vmem [#allocation8], %s276
        %s278 = smul.u32 2, %s23
        %s279 = ssub.s32 3, %s278
        %p280 = scmp.lt.s32.totalorder %s279, 2
        %s281 = scalar_select %p280, %s279, 2
        %s282 = smul.u32 128, %s281
        %s283 = smul.u32 2, %s23
        %s284 = ssub.s32 3, %s283
        %p285 = scmp.lt.s32.totalorder %s284, 2
        %s286 = scalar_select %p285, %s284, 2
        %s287 = smul.u32 128, %s286
        %v289 = vld [vmem:[%s243] sm:$0xff]
        %v290 = vld [vmem:[%s243 + $0x8] sm:$0xff]
        %v291 = vpack.c.bf16 %v290, %v289
        %v292 = vld [vmem:[#allocation5] sm:$0xf]
        %v293 = vld [vmem:[#allocation5 + $0x4] sm:$0xf]
        %v294 = vld [vmem:[#allocation5 + $0x8] sm:$0xf]
        %v295 = vld [vmem:[#allocation5 + $0xc] sm:$0xf]
        %v296 = vld [vmem:[#allocation5 + $0x10] sm:$0xf]
        %v297 = vld [vmem:[#allocation5 + $0x14] sm:$0xf]
        %v298 = vld [vmem:[#allocation5 + $0x18] sm:$0xf]
        %v299 = vld [vmem:[#allocation5 + $0x1c] sm:$0xf]
        %v300 = vld [vmem:[#allocation5 + $0x20] sm:$0xf]
        %v301 = vld [vmem:[#allocation5 + $0x24] sm:$0xf]
        %v302 = vld [vmem:[#allocation5 + $0x28] sm:$0xf]
        %v303 = vld [vmem:[#allocation5 + $0x2c] sm:$0xf]
        %v304 = vld [vmem:[#allocation5 + $0x30] sm:$0xf]
        %v305 = vld [vmem:[#allocation5 + $0x34] sm:$0xf]
        %v306 = vld [vmem:[#allocation5 + $0x38] sm:$0xf]
        %v307 = vld [vmem:[#allocation5 + $0x3c] sm:$0xf]
        %v308 = vld [vmem:[%s2] sm:$0x1]
        %v310 = vlaneseq
        %v311 = vshrl.u32 %v310, 7
        %v312 = vsub.s32 0, %v311
        %v313 = vrot.slane %v308, %v312
        %v331 = vunpack.c.l.b16 %v292
        %v332 = vunpack.c.l.b16 %v293
        %v333 = vunpack.c.l.b16 %v294
        %v334 = vunpack.c.l.b16 %v295
        %v335 = vunpack.c.l.b16 %v296
        %v336 = vunpack.c.l.b16 %v297
        %v337 = vunpack.c.l.b16 %v298
        %v338 = vunpack.c.l.b16 %v299
        %v339 = vunpack.c.l.b16 %v300
        %v340 = vunpack.c.l.b16 %v301
        %v341 = vunpack.c.l.b16 %v302
        %v342 = vunpack.c.l.b16 %v303
        %v343 = vunpack.c.l.b16 %v304
        %v344 = vunpack.c.l.b16 %v305
        %v345 = vunpack.c.l.b16 %v306
        %v346 = vunpack.c.l.b16 %v307
        %v347 = vpack.c.b16 %v332, %v331
        %v348 = vpack.c.b16 %v334, %v333
        %v349 = vpack.c.b16 %v336, %v335
        %v350 = vpack.c.b16 %v338, %v337
        %v351 = vpack.c.b16 %v340, %v339
        %v352 = vpack.c.b16 %v342, %v341
        %v353 = vpack.c.b16 %v344, %v343
        %v354 = vpack.c.b16 %v346, %v345
        %363 = vmatprep.subr.bf16.mxu0 0
        %364 = vmatpush1.bf16.msra.mxu0 %v354
        %365 = vmatprep.subr.bf16.mxu0 0
        %366 = vmatpush1.bf16.msra.mxu0 %v353
        %367 = vmatprep.subr.bf16.mxu0 0
        %368 = vmatpush1.bf16.msra.mxu0 %v352
        %369 = vmatprep.subr.bf16.mxu0 0
        %370 = vmatpush1.bf16.msra.mxu0 %v351
        %371 = vmatprep.subr.bf16.mxu0 0
        %372 = vmatpush1.bf16.msra.mxu0 %v350
        %373 = vmatprep.subr.bf16.mxu0 0
        %374 = vmatpush1.bf16.msra.mxu0 %v349
        %375 = vmatprep.subr.bf16.mxu0 0
        %376 = vmatpush1.bf16.msra.mxu0 %v348
        %377 = vmatprep.subr.bf16.mxu0 0
        %378 = vmatpush1.bf16.msra.mxu0 %v347
        %379 = vmatprep.subr.bf16.mxu0 0
        %380 = vmatpush2.bf16.msra.mxu0 0
        %381 = vmatprep.subr.bf16.mxu0 0
        %382 = vmatpush2.bf16.msra.mxu0 0
        %383 = vmatprep.subr.bf16.mxu0 0
        %384 = vmatpush2.bf16.msra.mxu0 0
        %385 = vmatprep.subr.bf16.mxu0 0
        %386 = vmatpush2.bf16.msra.mxu0 0
        %387 = vmatprep.subr.bf16.mxu0 0
        %388 = vmatpush2.bf16.msra.mxu0 0
        %389 = vmatprep.subr.bf16.mxu0 0
        %390 = vmatpush2.bf16.msra.mxu0 0
        %391 = vmatprep.subr.bf16.mxu0 0
        %392 = vmatpush2.bf16.msra.mxu0 0
        %393 = vmatprep.subr.bf16.mxu0 0
        %394 = vmatpush2.bf16.msra.mxu0 0
        %395 = vmatprep.mubr.bf16.mxu0 0
        %396 = vmatmul.mubr.bf16.gmra.mxu0 %v291
        %v397 = vpop.f32.mrf.mxu0
        %v398 = vadd.f32 %v313, %v397
        %v399 = vpop.f32.mrf.mxu0
        %v400 = vpop.f32.mrf.mxu0
        %v401 = vadd.f32 %v313, %v400
        %v402 = vpop.f32.mrf.mxu0
        %403 = vdwg.mxu0
        %v404 = vmax.f32 %v398, 0.0
        %v405 = vmax.f32 %v401, 0.0
        %v406 = vpack.c.bf16 %v405, %v404
        %v407 = vld [vmem:[#allocation7] sm:$0xf]
        %v408 = vld [vmem:[#allocation7 + $0x4] sm:$0xf]
        %v409 = vld [vmem:[#allocation7 + $0x8] sm:$0xf]
        %v410 = vld [vmem:[#allocation7 + $0xc] sm:$0xf]
        %v411 = vld [vmem:[#allocation7 + $0x10] sm:$0xf]
        %v412 = vld [vmem:[#allocation7 + $0x14] sm:$0xf]
        %v413 = vld [vmem:[#allocation7 + $0x18] sm:$0xf]
        %v414 = vld [vmem:[#allocation7 + $0x1c] sm:$0xf]
        %v415 = vld [vmem:[#allocation7 + $0x20] sm:$0xf]
        %v416 = vld [vmem:[#allocation7 + $0x24] sm:$0xf]
        %v417 = vld [vmem:[#allocation7 + $0x28] sm:$0xf]
        %v418 = vld [vmem:[#allocation7 + $0x2c] sm:$0xf]
        %v419 = vld [vmem:[#allocation7 + $0x30] sm:$0xf]
        %v420 = vld [vmem:[#allocation7 + $0x34] sm:$0xf]
        %v421 = vld [vmem:[#allocation7 + $0x38] sm:$0xf]
        %v422 = vld [vmem:[#allocation7 + $0x3c] sm:$0xf]
        %v423 = vld [vmem:[%s4] sm:$0x1]
        %v425 = vlaneseq
        %v426 = vshrl.u32 %v425, 7
        %v427 = vsub.s32 0, %v426
        %v428 = vrot.slane %v423, %v427
        %v446 = vunpack.c.l.b16 %v407
        %v447 = vunpack.c.l.b16 %v408
        %v448 = vunpack.c.l.b16 %v409
        %v449 = vunpack.c.l.b16 %v410
        %v450 = vunpack.c.l.b16 %v411
        %v451 = vunpack.c.l.b16 %v412
        %v452 = vunpack.c.l.b16 %v413
        %v453 = vunpack.c.l.b16 %v414
        %v454 = vunpack.c.l.b16 %v415
        %v455 = vunpack.c.l.b16 %v416
        %v456 = vunpack.c.l.b16 %v417
        %v457 = vunpack.c.l.b16 %v418
        %v458 = vunpack.c.l.b16 %v419
        %v459 = vunpack.c.l.b16 %v420
        %v460 = vunpack.c.l.b16 %v421
        %v461 = vunpack.c.l.b16 %v422
        %v462 = vpack.c.b16 %v447, %v446
        %v463 = vpack.c.b16 %v449, %v448
        %v464 = vpack.c.b16 %v451, %v450
        %v465 = vpack.c.b16 %v453, %v452
        %v466 = vpack.c.b16 %v455, %v454
        %v467 = vpack.c.b16 %v457, %v456
        %v468 = vpack.c.b16 %v459, %v458
        %v469 = vpack.c.b16 %v461, %v460
        %478 = vmatprep.subr.bf16.mxu0 0
        %479 = vmatpush1.bf16.msra.mxu0 %v469
        %480 = vmatprep.subr.bf16.mxu0 0
        %481 = vmatpush1.bf16.msra.mxu0 %v468
        %482 = vmatprep.subr.bf16.mxu0 0
        %483 = vmatpush1.bf16.msra.mxu0 %v467
        %484 = vmatprep.subr.bf16.mxu0 0
        %485 = vmatpush1.bf16.msra.mxu0 %v466
        %486 = vmatprep.subr.bf16.mxu0 0
        %487 = vmatpush1.bf16.msra.mxu0 %v465
        %488 = vmatprep.subr.bf16.mxu0 0
        %489 = vmatpush1.bf16.msra.mxu0 %v464
        %490 = vmatprep.subr.bf16.mxu0 0
        %491 = vmatpush1.bf16.msra.mxu0 %v463
        %492 = vmatprep.subr.bf16.mxu0 0
        %493 = vmatpush1.bf16.msra.mxu0 %v462
        %494 = vmatprep.subr.bf16.mxu0 0
        %495 = vmatpush2.bf16.msra.mxu0 0
        %496 = vmatprep.subr.bf16.mxu0 0
        %497 = vmatpush2.bf16.msra.mxu0 0
        %498 = vmatprep.subr.bf16.mxu0 0
        %499 = vmatpush2.bf16.msra.mxu0 0
        %500 = vmatprep.subr.bf16.mxu0 0
        %501 = vmatpush2.bf16.msra.mxu0 0
        %502 = vmatprep.subr.bf16.mxu0 0
        %503 = vmatpush2.bf16.msra.mxu0 0
        %504 = vmatprep.subr.bf16.mxu0 0
        %505 = vmatpush2.bf16.msra.mxu0 0
        %506 = vmatprep.subr.bf16.mxu0 0
        %507 = vmatpush2.bf16.msra.mxu0 0
        %508 = vmatprep.subr.bf16.mxu0 0
        %509 = vmatpush2.bf16.msra.mxu0 0
        %510 = vmatprep.mubr.bf16.mxu0 0
        %511 = vmatmul.mubr.bf16.gmra.mxu0 %v406
        %v512 = vpop.f32.mrf.mxu0
        %v513 = vadd.f32 %v428, %v512
        %v514 = vpop.f32.mrf.mxu0
        %v515 = vpop.f32.mrf.mxu0
        %v516 = vadd.f32 %v428, %v515
        %v517 = vpop.f32.mrf.mxu0
        %518 = vdwg.mxu0
        %v519 = vmax.f32 %v513, 0.0
        %v520 = vmax.f32 %v516, 0.0
        %521 = vst [vmem:[%s277] sm:$0xff] %v519
        %522 = vst [vmem:[%s277 + $0x8] sm:$0xff] %v520
        %s523 = sand.u32 %s141, 1
        %s524 = scalar_lea.sflag [#allocation4], %s523
        %s525 = sand.u32 %s141, 1
        %s526 = smul.addr %s525, 16
        %s527 = scalar_lea.vmem [#allocation8], %s526
        // Predicated region
        $region53: #{tpu_custom_call.1} parent=39 // pred_check
          %p528 = pneg %p151
        $region54: #{tpu_custom_call.1} parent=39 // pred_check_branch
          %530 = sbr.rel (%p528) target = $region56
        $region55: #{tpu_custom_call.1} parent=39 // pred_region
          %s531 = smul.u32 2, %s23
          %s532 = ssub.s32 3, %s531
          %p533 = scmp.lt.s32.totalorder %s532, 2
          %s534 = scalar_select %p533, %s532, 2
          %s535 = smul.u32 128, %s534
          %s537 = ssub.s32 256, %s535
          %538 = vsyncadd %s524, %s537
          %p539 = scmp.ne.s32.totalorder 0, %s535
          %s540 = smul.addr %s531, 128
          %s541 = scalar_lea.hbm %s5, %s540
          %s542 = smul.u32 8, %s534
          %s543 = sshll.u32 %s527, 4
          %s544 = int_to_ptr.vmem [resolvable:$true] %s543
          %s545 = sshll.u32 %s542, 4
          %549 = dma.vmem_to_hbm [thread:$0]  (%p539), %s544, %s545, %s541, %s524, 128, 128, 8
        $region56: #{tpu_custom_call.1} parent=39 // pred_fallthru
          _
      $region40: #{tpu_custom_call.1} parent=5 // pred_fallthru
        _
      %p550 = scmp.le.s32.totalorder 2, %s18
      // Predicated region
      $region57: #{tpu_custom_call.1} parent=5 // pred_check
        %p551 = pneg %p550
      $region58: #{tpu_custom_call.1} parent=5 // pred_check_branch
        %553 = sbr.rel (%p551) target = $region60
      $region59: #{tpu_custom_call.1} parent=5 // pred_region
        %s554 = ssub.s32 %s18, 2
        // Predicated region
        $region61: #{tpu_custom_call.1} parent=59 // pred_check
          %p555 = pneg %p157
        $region62: #{tpu_custom_call.1} parent=59 // pred_check_branch
          %557 = sbr.rel (%p555) target = $region64
        $region63: #{tpu_custom_call.1} parent=59 // pred_region
          %s558 = sand.u32 %s142, 1
          %s559 = scalar_lea.sflag [#allocation4], %s558
          %s560 = sand.u32 %s142, 1
          %s561 = smul.addr %s560, 16
          %s562 = scalar_lea.vmem [#allocation8], %s561
          %563 = dma.done %s559, 256
        $region64: #{tpu_custom_call.1} parent=59 // pred_fallthru
          _
      $region60: #{tpu_custom_call.1} parent=5 // pred_fallthru
        _
    $region6: #{tpu_custom_call.1} parent=1 // loop_footer
      %s22 = sadd.s32 1, %s18
    $region7: #{tpu_custom_call.1} parent=1 // loop_footer_branch
      %17 = sbr.rel target = $region3
    $region8: #{tpu_custom_call.1} parent=1 // loop_exit
      _
    %564 = vsyncpa [#allocation3], 1
    %s565 = scalar_lea.sflag [#allocation3], 1
    %566 = vsyncpa %s565, 1
    %567 = vsyncpa [#allocation6], 1
    %568 = vsyncpa [#allocation4], 1
    %s569 = scalar_lea.sflag [#allocation4], 1
    %570 = vsyncpa %s569, 1

</llo_original>
